<compile_context>
chip_gen: v5e
topology: v5e:2x2
jax: 0.10.0
libtpu: 0.0.40
codegen_flags: <defaults>
</compile_context>

<pallas_src>
import functools

import jax
import jax.numpy as jnp
from jax import lax
from jax.experimental import pallas as pl
from jax.experimental.pallas import tpu as pltpu


# --------------------------- fused Pallas kernel -----------------------------

def _convff_ln_kernel(x_ref, lo_ref, hi_ref, w1_ref, b1_ref, w2_ref, b2_ref,
                      g_ref, be_ref, o_ref, *, K, tT, T, eps, pre_lnorm):
    pad = K // 2
    H = K - 1                        # halo rows on each side of the tile
    W = tT + 2 * H                   # x window rows for this tile
    Hh = tT + 2 * pad                # h rows needed by this tile's outputs
    D = x_ref.shape[2]
    d_inner = w1_ref.shape[2]

    t0 = pl.program_id(1) * tT       # global time index of the tile's 1st row

    # Halo'd input window (W, D): [left halo | tile | right halo].
    xw = jnp.concatenate([lo_ref[0, 0], x_ref[0], hi_ref[0, 0]], axis=0)

    def layernorm(z):                # f32 LayerNorm over channels
        mu = jnp.mean(z, axis=-1, keepdims=True)
        zc = z - mu
        var = jnp.mean(zc * zc, axis=-1, keepdims=True)
        return zc * lax.rsqrt(var + eps) * g_ref[...] + be_ref[...]

    if pre_lnorm:
        # Conv zero-padding is applied AFTER the LayerNorm in the reference,
        # so zero every window row that lies outside the true sequence [0, T).
        gw = t0 - H + lax.broadcasted_iota(jnp.int32, (W, 1), 0)
        xin = jnp.where((gw >= 0) & (gw < T), layernorm(xw), 0.0)
    else:
        xin = xw                     # halo / pad rows are already exact zeros

    # ---- conv1 + bias + ReLU:  h[j] = sum_k xin[j + k] @ w1[k] --------------
    # Per-tap MXU matmuls accumulated in f32; the shifted operand is the small
    # (W, D) input window via static sublane-offset slices.
    h = jnp.zeros((Hh, d_inner), jnp.float32)
    for k in range(K):
        h = h + jnp.dot(xin[k:k + Hh, :].astype(jnp.bfloat16), w1_ref[k],
                        preferred_element_type=jnp.float32)
    h = jnp.maximum(h + b1_ref[...], 0.0)

    # conv2's 'same' zero padding: h values outside [0, T) must read as zero.
    gh = t0 - pad + lax.broadcasted_iota(jnp.int32, (Hh, 1), 0)
    h = jnp.where((gh >= 0) & (gh < T), h, 0.0)
    h_b = h.astype(jnp.bfloat16)

    # ---- conv2 + bias:  y[o] = sum_k h[o + k] @ w2[k] -----------------------
    # Shift the (Hh, D) per-tap OUTPUT, not the (Hh, d_inner) input.
    y = jnp.zeros((tT, D), jnp.float32)
    for k in range(K):
        u = jnp.dot(h_b, w2_ref[k], preferred_element_type=jnp.float32)
        y = y + u[k:k + tT, :]
    y = y + b2_ref[...]

    x_res = xw[H:H + tT, :]          # original (un-normalized) residual rows
    out = (y + x_res) if pre_lnorm else layernorm(x_res + y)
    o_ref[0] = out.astype(o_ref.dtype)


# --------------------------- wrapper ------------------------------------------

def _round_up(n, m):
    return ((n + m - 1) // m) * m


def _vmem_budget_bytes(tT, K, D, d_inner):
    pad = K // 2
    H = K - 1
    W = tT + 2 * H
    Hh = tT + 2 * pad
    weights = 2 * K * D * d_inner * 2 + 8 * (D + d_inner)       # bf16 w1+w2 (+f32 biases/LN)
    pipelined = 2 * 2 * (tT * D + 2 * H * D) * 4                # x/out tiles + halos, dbl-buffered
    live = (3 * W * D + Hh * D + 2 * tT * D) * 4 + Hh * d_inner * (4 + 2)
    est = weights + pipelined + live
    return int(min(64 * 1024 * 1024, max(32 * 1024 * 1024, 2 * est)))


def positionwise_conv_ff(x, w1_t, b1, w2_t, b2, gamma, beta, *,
                         eps=1e-5, pre_lnorm=False, time_tile=512):
    """x: (B, T, d_model) f32.
    w1_t: (d_inner, d_model, K), w2_t: (d_model, d_inner, K) in PyTorch Conv1d
    weight layout; b1 / b2 / gamma / beta are 1-D."""
    B, T, D = x.shape
    d_inner, _, K = w1_t.shape
    assert K % 2 == 1, "'same'-padded Conv1d requires an odd kernel size"
    assert K >= 3  # TODO(synk): K == 1 (pointwise conv) would need a no-halo path
    H = K - 1                                        # halo rows per side

    # Time tiling: pad T up to a multiple of the tile so every block is full.
    tT = max(8, min(int(time_tile), _round_up(T, 8)))
    tT = _round_up(tT, 8)
    assert tT >= H
    nT = pl.cdiv(T, tT)
    T_eff = nT * tT

    x_eff = jnp.pad(x, ((0, 0), (0, T_eff - T), (0, 0)))          # (B, T_eff, D)
    xp = jnp.pad(x_eff, ((0, 0), (H, H), (0, 0)))                 # (B, T_eff + 2H, D)
    # halo_lo[b, t] = x rows [t*tT - H, t*tT); halo_hi[b, t] = rows [(t+1)*tT, (t+1)*tT + H)
    halo_lo = xp[:, :T_eff, :].reshape(B, nT, tT, D)[:, :, :H, :]
    halo_hi = xp[:, 2 * H:, :].reshape(B, nT, tT, D)[:, :, tT - H:, :]

    # (Cout, Cin, K) -> (K, Cin, Cout), bf16 for MXU throughput / half the VMEM.
    w1 = jnp.transpose(w1_t, (2, 1, 0)).astype(jnp.bfloat16)      # (K, D, d_inner)
    w2 = jnp.transpose(w2_t, (2, 1, 0)).astype(jnp.bfloat16)      # (K, d_inner, D)

    kernel = functools.partial(_convff_ln_kernel, K=K, tT=tT, T=T, eps=eps,
                               pre_lnorm=pre_lnorm)

    # Whole-array VMEM residency: loaded once, never re-fetched, never
    # double-buffered (saves ~2x the weight bytes vs. a blocked spec).
    resident = pl.BlockSpec(memory_space=pltpu.MemorySpace.VMEM)

    flops = 4 * B * T_eff * K * D * d_inner                       # two convs, 2 flops/MAC
    bytes_accessed = (x_eff.size + B * T_eff * D) * 4 + (w1.size + w2.size) * 2

    out = pl.pallas_call(
        kernel,
        out_shape=jax.ShapeDtypeStruct((B, T_eff, D), x.dtype),
        grid=(B, nT),
        in_specs=[
            pl.BlockSpec((1, tT, D), lambda b, t: (b, t, 0)),       # x tile
            pl.BlockSpec((1, 1, H, D), lambda b, t: (b, t, 0, 0)),  # left halo
            pl.BlockSpec((1, 1, H, D), lambda b, t: (b, t, 0, 0)),  # right halo
            resident,                                               # conv1 weight
            resident,                                               # conv1 bias
            resident,                                               # conv2 weight
            resident,                                               # conv2 bias
            resident,                                               # LN gamma
            resident,                                               # LN beta
        ],
        out_specs=pl.BlockSpec((1, tT, D), lambda b, t: (b, t, 0)),
        compiler_params=pltpu.CompilerParams(
            dimension_semantics=("parallel", "parallel"),           # B and T tiles
            vmem_limit_bytes=_vmem_budget_bytes(tT, K, D, d_inner)),
        cost_estimate=pl.CostEstimate(flops=flops,
                                      transcendentals=B * T_eff,
                                      bytes_accessed=bytes_accessed),
    )(x_eff, halo_lo, halo_hi,
      w1, b1.reshape(1, d_inner).astype(jnp.float32),
      w2, b2.reshape(1, D).astype(jnp.float32),
      gamma.reshape(1, D).astype(jnp.float32),
      beta.reshape(1, D).astype(jnp.float32))
    return out[:, :T, :]


# --------------------------- pure-JAX reference ------------------------------

def _reference_forward(x, w1_t, b1, w2_t, b2, gamma, beta,
                       eps=1e-5, pre_lnorm=False):
    T = x.shape[1]

    def conv1d_same(a, w_t, b):                    # a (B,T,Cin), w_t (Cout,Cin,K)
        K = w_t.shape[-1]
        pad = K // 2
        w = jnp.transpose(w_t, (2, 1, 0))          # (K, Cin, Cout)
        ap = jnp.pad(a, ((0, 0), (pad, pad), (0, 0)))
        out = sum(jnp.einsum('btc,cd->btd', ap[:, k:k + T, :], w[k])
                  for k in range(K))
        return out + b

    def ln(z):
        mu = jnp.mean(z, axis=-1, keepdims=True)
        var = jnp.mean((z - mu) ** 2, axis=-1, keepdims=True)
        return (z - mu) / jnp.sqrt(var + eps) * gamma + beta

    inp = ln(x) if pre_lnorm else x
    core = conv1d_same(inp, w1_t, b1)
    core = jnp.maximum(core, 0.0)
    core = conv1d_same(core, w2_t, b2)
    return (core + x) if pre_lnorm else ln(x + core)


# --------------------------- driver ------------------------------------------

if __name__ == "__main__":
    d_model, d_inner, K = 32, 64, 3

    key = jax.random.PRNGKey(0)
    kx, k1, k2, k3, k4, k5, k6 = jax.random.split(key, 7)
    w1 = jax.random.normal(k1, (d_inner, d_model, K), jnp.float32) * 0.05
    b1 = jax.random.normal(k2, (d_inner,), jnp.float32) * 0.05
    w2 = jax.random.normal(k3, (d_model, d_inner, K), jnp.float32) * 0.05
    b2 = jax.random.normal(k4, (d_model,), jnp.float32) * 0.05
    gamma = 1.0 + 0.1 * jax.random.normal(k5, (d_model,), jnp.float32)
    beta = 0.1 * jax.random.normal(k6, (d_model,), jnp.float32)

    cases = [
        dict(B=2, T=16, time_tile=512),   # single time tile per batch row
        dict(B=2, T=20, time_tile=8),     # multi-tile path (halos) + ragged T
    ]
    for case in cases:
        B, T, time_tile = case["B"], case["T"], case["time_tile"]
        kx, sub = jax.random.split(kx)
        x = jax.random.normal(sub, (B, T, d_model), jnp.float32)
        for pre_lnorm in (False, True):
            out = positionwise_conv_ff(x, w1, b1, w2, b2, gamma, beta,
                                       pre_lnorm=pre_lnorm, time_tile=time_tile)
            out = jax.block_until_ready(out)
            ref = _reference_forward(x, w1, b1, w2, b2, gamma, beta,
                                     pre_lnorm=pre_lnorm)
            assert out.shape == (B, T, d_model)
            assert bool(jnp.all(jnp.isfinite(out)))
            err = float(jnp.max(jnp.abs(out - ref)))
            assert err < 5e-2, f"max abs err {err} ({case}, pre_lnorm={pre_lnorm})"

    print("KERNEL_OK")
</pallas_src>

<mosaic_0001>
module attributes {stable_mosaic.version = 11 : i64} {
  func.func @_convff_ln_kernel(%arg0: i32, %arg1: i32, %arg2: memref<1x16x32xf32, #tpu.memory_space<vmem>>, %arg3: memref<1x1x2x32xf32, #tpu.memory_space<vmem>>, %arg4: memref<1x1x2x32xf32, #tpu.memory_space<vmem>>, %arg5: memref<3x32x64xbf16, #tpu.memory_space<vmem>>, %arg6: memref<1x64xf32, #tpu.memory_space<vmem>>, %arg7: memref<3x64x32xbf16, #tpu.memory_space<vmem>>, %arg8: memref<1x32xf32, #tpu.memory_space<vmem>>, %arg9: memref<1x32xf32, #tpu.memory_space<vmem>>, %arg10: memref<1x32xf32, #tpu.memory_space<vmem>>, %arg11: memref<1x16x32xf32, #tpu.memory_space<vmem>>) attributes {dimension_semantics = [#tpu.dimension_semantics<parallel>, #tpu.dimension_semantics<parallel>], iteration_bounds = array<i64: 2, 1>, scalar_prefetch = 0 : i64, scratch_operands = 0 : i64, tpu.core_type = #tpu.core_type<tc>, window_params = [{transform_indices = @transform_0, window_bounds = array<i64: 1, 16, 32>}, {transform_indices = @transform_1, window_bounds = array<i64: 1, 1, 2, 32>}, {transform_indices = @transform_2, window_bounds = array<i64: 1, 1, 2, 32>}, {pipeline_mode = #tpu.pipeline_mode<synchronous>, transform_indices = @transform_3, window_bounds = array<i64: 3, 32, 64>}, {pipeline_mode = #tpu.pipeline_mode<synchronous>, transform_indices = @transform_4, window_bounds = array<i64: 1, 64>}, {pipeline_mode = #tpu.pipeline_mode<synchronous>, transform_indices = @transform_5, window_bounds = array<i64: 3, 64, 32>}, {pipeline_mode = #tpu.pipeline_mode<synchronous>, transform_indices = @transform_6, window_bounds = array<i64: 1, 32>}, {pipeline_mode = #tpu.pipeline_mode<synchronous>, transform_indices = @transform_7, window_bounds = array<i64: 1, 32>}, {pipeline_mode = #tpu.pipeline_mode<synchronous>, transform_indices = @transform_8, window_bounds = array<i64: 1, 32>}, {transform_indices = @transform_9, window_bounds = array<i64: 1, 16, 32>}]} {
    %c16_i32 = arith.constant 16 : i32
    %0 = arith.muli %arg1, %c16_i32 : i32
    %c0 = arith.constant 0 : index
    %c0_0 = arith.constant 0 : index
    %c0_1 = arith.constant 0 : index
    %c0_2 = arith.constant 0 : index
    %1 = vector.load %arg3[%c0, %c0_0, %c0_1, %c0_2] : memref<1x1x2x32xf32, #tpu.memory_space<vmem>>, vector<1x1x2x32xf32>
    %2 = vector.shape_cast %1 : vector<1x1x2x32xf32> to vector<2x32xf32>
    %c0_3 = arith.constant 0 : index
    %c0_4 = arith.constant 0 : index
    %c0_5 = arith.constant 0 : index
    %3 = vector.load %arg2[%c0_3, %c0_4, %c0_5] : memref<1x16x32xf32, #tpu.memory_space<vmem>>, vector<1x16x32xf32>
    %4 = vector.shape_cast %3 : vector<1x16x32xf32> to vector<16x32xf32>
    %c0_6 = arith.constant 0 : index
    %c0_7 = arith.constant 0 : index
    %c0_8 = arith.constant 0 : index
    %c0_9 = arith.constant 0 : index
    %5 = vector.load %arg4[%c0_6, %c0_7, %c0_8, %c0_9] : memref<1x1x2x32xf32, #tpu.memory_space<vmem>>, vector<1x1x2x32xf32>
    %6 = vector.shape_cast %5 : vector<1x1x2x32xf32> to vector<2x32xf32>
    %7 = tpu.concatenate %2, %4, %6 in 0 : vector<2x32xf32>, vector<16x32xf32>, vector<2x32xf32> -> vector<20x32xf32>
    %cst = arith.constant 0.000000e+00 : f32
    %8 = vector.broadcast %cst : f32 to vector<18x64xf32>
    %9 = vector.extract_strided_slice %7 {offsets = [0, 0], sizes = [18, 32], strides = [1, 1]} : vector<20x32xf32> to vector<18x32xf32>
    %10 = arith.truncf %9 : vector<18x32xf32> to vector<18x32xbf16>
    %c0_10 = arith.constant 0 : index
    %c0_11 = arith.constant 0 : index
    %c0_12 = arith.constant 0 : index
    %11 = vector.load %arg5[%c0_10, %c0_11, %c0_12] : memref<3x32x64xbf16, #tpu.memory_space<vmem>>, vector<1x32x64xbf16>
    %12 = vector.shape_cast %11 : vector<1x32x64xbf16> to vector<32x64xbf16>
    %cst_13 = arith.constant dense<0.000000e+00> : vector<18x64xf32>
    %13 = tpu.matmul %10, %12, %cst_13 {dimension_numbers = #tpu.dot_dimension_numbers<[1], [0], [0], [1], [0, 0, 1, 1], [], []>} : vector<18x32xbf16>, vector<32x64xbf16>, vector<18x64xf32> -> vector<18x64xf32>
    %14 = arith.addf %8, %13 : vector<18x64xf32>
    %15 = vector.extract_strided_slice %7 {offsets = [1, 0], sizes = [18, 32], strides = [1, 1]} : vector<20x32xf32> to vector<18x32xf32>
    %16 = arith.truncf %15 : vector<18x32xf32> to vector<18x32xbf16>
    %c1 = arith.constant 1 : index
    %c0_14 = arith.constant 0 : index
    %c0_15 = arith.constant 0 : index
    %17 = vector.load %arg5[%c1, %c0_14, %c0_15] : memref<3x32x64xbf16, #tpu.memory_space<vmem>>, vector<1x32x64xbf16>
    %18 = vector.shape_cast %17 : vector<1x32x64xbf16> to vector<32x64xbf16>
    %cst_16 = arith.constant dense<0.000000e+00> : vector<18x64xf32>
    %19 = tpu.matmul %16, %18, %cst_16 {dimension_numbers = #tpu.dot_dimension_numbers<[1], [0], [0], [1], [0, 0, 1, 1], [], []>} : vector<18x32xbf16>, vector<32x64xbf16>, vector<18x64xf32> -> vector<18x64xf32>
    %20 = arith.addf %14, %19 : vector<18x64xf32>
    %21 = vector.extract_strided_slice %7 {offsets = [2, 0], sizes = [18, 32], strides = [1, 1]} : vector<20x32xf32> to vector<18x32xf32>
    %22 = arith.truncf %21 : vector<18x32xf32> to vector<18x32xbf16>
    %c2 = arith.constant 2 : index
    %c0_17 = arith.constant 0 : index
    %c0_18 = arith.constant 0 : index
    %23 = vector.load %arg5[%c2, %c0_17, %c0_18] : memref<3x32x64xbf16, #tpu.memory_space<vmem>>, vector<1x32x64xbf16>
    %24 = vector.shape_cast %23 : vector<1x32x64xbf16> to vector<32x64xbf16>
    %cst_19 = arith.constant dense<0.000000e+00> : vector<18x64xf32>
    %25 = tpu.matmul %22, %24, %cst_19 {dimension_numbers = #tpu.dot_dimension_numbers<[1], [0], [0], [1], [0, 0, 1, 1], [], []>} : vector<18x32xbf16>, vector<32x64xbf16>, vector<18x64xf32> -> vector<18x64xf32>
    %26 = arith.addf %20, %25 : vector<18x64xf32>
    %c0_20 = arith.constant 0 : index
    %c0_21 = arith.constant 0 : index
    %27 = vector.load %arg6[%c0_20, %c0_21] : memref<1x64xf32, #tpu.memory_space<vmem>>, vector<1x64xf32>
    %28 = vector.broadcast %27 : vector<1x64xf32> to vector<18x64xf32>
    %29 = arith.addf %26, %28 : vector<18x64xf32>
    %cst_22 = arith.constant 0.000000e+00 : f32
    %30 = vector.broadcast %cst_22 : f32 to vector<18x64xf32>
    %31 = arith.maximumf %29, %30 : vector<18x64xf32>
    %c1_i32 = arith.constant 1 : i32
    %32 = arith.subi %0, %c1_i32 : i32
    %33 = tpu.iota {dimensions = array<i32: 0>} : vector<18x1xi32>
    %34 = vector.broadcast %32 : i32 to vector<18x1xi32>
    %35 = arith.addi %34, %33 : vector<18x1xi32>
    %c0_i32 = arith.constant 0 : i32
    %36 = vector.broadcast %c0_i32 : i32 to vector<18x1xi32>
    %37 = arith.cmpi sge, %35, %36 : vector<18x1xi32>
    %c16_i32_23 = arith.constant 16 : i32
    %38 = vector.broadcast %c16_i32_23 : i32 to vector<18x1xi32>
    %39 = arith.cmpi slt, %35, %38 : vector<18x1xi32>
    %40 = arith.andi %37, %39 : vector<18x1xi1>
    %cst_24 = arith.constant 0.000000e+00 : f32
    %41 = vector.shape_cast %40 : vector<18x1xi1> to vector<18x1xi1>
    %42 = vector.broadcast %41 : vector<18x1xi1> to vector<18x64xi1>
    %43 = vector.broadcast %cst_24 : f32 to vector<18x64xf32>
    %44 = arith.select %42, %31, %43 : vector<18x64xi1>, vector<18x64xf32>
    %45 = arith.truncf %44 : vector<18x64xf32> to vector<18x64xbf16>
    %cst_25 = arith.constant 0.000000e+00 : f32
    %46 = vector.broadcast %cst_25 : f32 to vector<16x32xf32>
    %c0_26 = arith.constant 0 : index
    %c0_27 = arith.constant 0 : index
    %c0_28 = arith.constant 0 : index
    %47 = vector.load %arg7[%c0_26, %c0_27, %c0_28] : memref<3x64x32xbf16, #tpu.memory_space<vmem>>, vector<1x64x32xbf16>
    %48 = vector.shape_cast %47 : vector<1x64x32xbf16> to vector<64x32xbf16>
    %cst_29 = arith.constant dense<0.000000e+00> : vector<18x32xf32>
    %49 = tpu.matmul %45, %48, %cst_29 {dimension_numbers = #tpu.dot_dimension_numbers<[1], [0], [0], [1], [0, 0, 1, 1], [], []>} : vector<18x64xbf16>, vector<64x32xbf16>, vector<18x32xf32> -> vector<18x32xf32>
    %50 = vector.extract_strided_slice %49 {offsets = [0, 0], sizes = [16, 32], strides = [1, 1]} : vector<18x32xf32> to vector<16x32xf32>
    %51 = arith.addf %46, %50 : vector<16x32xf32>
    %c1_30 = arith.constant 1 : index
    %c0_31 = arith.constant 0 : index
    %c0_32 = arith.constant 0 : index
    %52 = vector.load %arg7[%c1_30, %c0_31, %c0_32] : memref<3x64x32xbf16, #tpu.memory_space<vmem>>, vector<1x64x32xbf16>
    %53 = vector.shape_cast %52 : vector<1x64x32xbf16> to vector<64x32xbf16>
    %cst_33 = arith.constant dense<0.000000e+00> : vector<18x32xf32>
    %54 = tpu.matmul %45, %53, %cst_33 {dimension_numbers = #tpu.dot_dimension_numbers<[1], [0], [0], [1], [0, 0, 1, 1], [], []>} : vector<18x64xbf16>, vector<64x32xbf16>, vector<18x32xf32> -> vector<18x32xf32>
    %55 = vector.extract_strided_slice %54 {offsets = [1, 0], sizes = [16, 32], strides = [1, 1]} : vector<18x32xf32> to vector<16x32xf32>
    %56 = arith.addf %51, %55 : vector<16x32xf32>
    %c2_34 = arith.constant 2 : index
    %c0_35 = arith.constant 0 : index
    %c0_36 = arith.constant 0 : index
    %57 = vector.load %arg7[%c2_34, %c0_35, %c0_36] : memref<3x64x32xbf16, #tpu.memory_space<vmem>>, vector<1x64x32xbf16>
    %58 = vector.shape_cast %57 : vector<1x64x32xbf16> to vector<64x32xbf16>
    %cst_37 = arith.constant dense<0.000000e+00> : vector<18x32xf32>
    %59 = tpu.matmul %45, %58, %cst_37 {dimension_numbers = #tpu.dot_dimension_numbers<[1], [0], [0], [1], [0, 0, 1, 1], [], []>} : vector<18x64xbf16>, vector<64x32xbf16>, vector<18x32xf32> -> vector<18x32xf32>
    %60 = vector.extract_strided_slice %59 {offsets = [2, 0], sizes = [16, 32], strides = [1, 1]} : vector<18x32xf32> to vector<16x32xf32>
    %61 = arith.addf %56, %60 : vector<16x32xf32>
    %c0_38 = arith.constant 0 : index
    %c0_39 = arith.constant 0 : index
    %62 = vector.load %arg8[%c0_38, %c0_39] : memref<1x32xf32, #tpu.memory_space<vmem>>, vector<1x32xf32>
    %63 = vector.broadcast %62 : vector<1x32xf32> to vector<16x32xf32>
    %64 = arith.addf %61, %63 : vector<16x32xf32>
    %65 = vector.extract_strided_slice %7 {offsets = [2, 0], sizes = [16, 32], strides = [1, 1]} : vector<20x32xf32> to vector<16x32xf32>
    %66 = arith.addf %65, %64 : vector<16x32xf32>
    %cst_40 = arith.constant dense<0.000000e+00> : vector<16xf32>
    %67 = vector.multi_reduction <add>, %66, %cst_40 [1] : vector<16x32xf32> to vector<16xf32>
    %68 = vector.shape_cast %67 : vector<16xf32> to vector<16x1xf32>
    %cst_41 = arith.constant 3.200000e+01 : f32
    %69 = vector.broadcast %cst_41 : f32 to vector<16x1xf32>
    %70 = arith.divf %68, %69 : vector<16x1xf32>
    %71 = vector.broadcast %70 : vector<16x1xf32> to vector<16x32xf32>
    %72 = arith.subf %66, %71 : vector<16x32xf32>
    %73 = arith.mulf %72, %72 : vector<16x32xf32>
    %cst_42 = arith.constant dense<0.000000e+00> : vector<16xf32>
    %74 = vector.multi_reduction <add>, %73, %cst_42 [1] : vector<16x32xf32> to vector<16xf32>
    %75 = vector.shape_cast %74 : vector<16xf32> to vector<16x1xf32>
    %cst_43 = arith.constant 3.200000e+01 : f32
    %76 = vector.broadcast %cst_43 : f32 to vector<16x1xf32>
    %77 = arith.divf %75, %76 : vector<16x1xf32>
    %cst_44 = arith.constant 9.99999974E-6 : f32
    %78 = vector.broadcast %cst_44 : f32 to vector<16x1xf32>
    %79 = arith.addf %77, %78 : vector<16x1xf32>
    %80 = math.rsqrt %79 : vector<16x1xf32>
    %81 = vector.broadcast %80 : vector<16x1xf32> to vector<16x32xf32>
    %82 = arith.mulf %72, %81 : vector<16x32xf32>
    %c0_45 = arith.constant 0 : index
    %c0_46 = arith.constant 0 : index
    %83 = vector.load %arg9[%c0_45, %c0_46] : memref<1x32xf32, #tpu.memory_space<vmem>>, vector<1x32xf32>
    %84 = vector.broadcast %83 : vector<1x32xf32> to vector<16x32xf32>
    %85 = arith.mulf %82, %84 : vector<16x32xf32>
    %c0_47 = arith.constant 0 : index
    %c0_48 = arith.constant 0 : index
    %86 = vector.load %arg10[%c0_47, %c0_48] : memref<1x32xf32, #tpu.memory_space<vmem>>, vector<1x32xf32>
    %87 = vector.broadcast %86 : vector<1x32xf32> to vector<16x32xf32>
    %88 = arith.addf %85, %87 : vector<16x32xf32>
    %c0_49 = arith.constant 0 : index
    %c0_50 = arith.constant 0 : index
    %c0_51 = arith.constant 0 : index
    %89 = vector.load %arg11[%c0_49, %c0_50, %c0_51] : memref<1x16x32xf32, #tpu.memory_space<vmem>>, vector<1x16x32xf32>
    %90 = vector.shape_cast %89 : vector<1x16x32xf32> to vector<16x32xf32>
    %91 = vector.shape_cast %88 : vector<16x32xf32> to vector<1x16x32xf32>
    tpu.vector_store %arg11[%c0_49, %c0_50, %c0_51], %91 {strides = array<i32>} : memref<1x16x32xf32, #tpu.memory_space<vmem>>, vector<1x16x32xf32>,
    return
  }
  func.func @transform_0(%arg0: i32, %arg1: i32) -> (i32, i32, i32) {
    %c0_i32 = arith.constant 0 : i32
    %c0_i32_0 = arith.constant 0 : i32
    return %arg0, %arg1, %c0_i32 : i32, i32, i32
  }
  func.func @transform_1(%arg0: i32, %arg1: i32) -> (i32, i32, i32, i32) {
    %c0_i32 = arith.constant 0 : i32
    %c0_i32_0 = arith.constant 0 : i32
    %c0_i32_1 = arith.constant 0 : i32
    return %arg0, %arg1, %c0_i32, %c0_i32_0 : i32, i32, i32, i32
  }
  func.func @transform_2(%arg0: i32, %arg1: i32) -> (i32, i32, i32, i32) {
    %c0_i32 = arith.constant 0 : i32
    %c0_i32_0 = arith.constant 0 : i32
    %c0_i32_1 = arith.constant 0 : i32
    return %arg0, %arg1, %c0_i32, %c0_i32_0 : i32, i32, i32, i32
  }
  func.func @transform_3(%arg0: i32, %arg1: i32) -> (i32, i32, i32) {
    %c0_i32 = arith.constant 0 : i32
    %c0_i32_0 = arith.constant 0 : i32
    %c0_i32_1 = arith.constant 0 : i32
    %c0_i32_2 = arith.constant 0 : i32
    return %c0_i32, %c0_i32_0, %c0_i32_1 : i32, i32, i32
  }
  func.func @transform_4(%arg0: i32, %arg1: i32) -> (i32, i32) {
    %c0_i32 = arith.constant 0 : i32
    %c0_i32_0 = arith.constant 0 : i32
    %c0_i32_1 = arith.constant 0 : i32
    return %c0_i32, %c0_i32_0 : i32, i32
  }
  func.func @transform_5(%arg0: i32, %arg1: i32) -> (i32, i32, i32) {
    %c0_i32 = arith.constant 0 : i32
    %c0_i32_0 = arith.constant 0 : i32
    %c0_i32_1 = arith.constant 0 : i32
    %c0_i32_2 = arith.constant 0 : i32
    return %c0_i32, %c0_i32_0, %c0_i32_1 : i32, i32, i32
  }
  func.func @transform_6(%arg0: i32, %arg1: i32) -> (i32, i32) {
    %c0_i32 = arith.constant 0 : i32
    %c0_i32_0 = arith.constant 0 : i32
    %c0_i32_1 = arith.constant 0 : i32
    return %c0_i32, %c0_i32_0 : i32, i32
  }
  func.func @transform_7(%arg0: i32, %arg1: i32) -> (i32, i32) {
    %c0_i32 = arith.constant 0 : i32
    %c0_i32_0 = arith.constant 0 : i32
    %c0_i32_1 = arith.constant 0 : i32
    return %c0_i32, %c0_i32_0 : i32, i32
  }
  func.func @transform_8(%arg0: i32, %arg1: i32) -> (i32, i32) {
    %c0_i32 = arith.constant 0 : i32
    %c0_i32_0 = arith.constant 0 : i32
    %c0_i32_1 = arith.constant 0 : i32
    return %c0_i32, %c0_i32_0 : i32, i32
  }
  func.func @transform_9(%arg0: i32, %arg1: i32) -> (i32, i32, i32) {
    %c0_i32 = arith.constant 0 : i32
    %c0_i32_0 = arith.constant 0 : i32
    return %arg0, %arg1, %c0_i32 : i32, i32, i32
  }
}

</mosaic_0001>

<llo_original>
// kernel: tpu_custom_call.1
$region0: #{tpu_custom_call.1}
  #allocation0 [shape = 'u32[]', space=smem, size = 0x4, offset = 0x4, fixed_abs, tag = 'smem constant byte address 0x4 - core index']
  #allocation1 [shape = 'u32[72,128]{1,0:T(1,128)}', space=vmem, size = 0x9000, scoped, tag = 'internal scratch']
  %s0 = inlined_call_operand.vmem [shape: f32[2,16,32], index: 0, kind: input, shape index: {}]
  %s1 = inlined_call_operand.vmem [shape: f32[2,1,2,32], index: 1, kind: input, shape index: {}]
  %s2 = inlined_call_operand.vmem [shape: f32[2,1,2,32], index: 2, kind: input, shape index: {}]
  %s3 = inlined_call_operand.vmem [shape: bf16[3,32,64], index: 3, kind: input, shape index: {}]
  %s4 = inlined_call_operand.vmem [shape: f32[1,64], index: 4, kind: input, shape index: {}]
  %s5 = inlined_call_operand.vmem [shape: bf16[3,64,32], index: 5, kind: input, shape index: {}]
  %s6 = inlined_call_operand.vmem [shape: f32[1,32], index: 6, kind: input, shape index: {}]
  %s7 = inlined_call_operand.vmem [shape: f32[1,32], index: 7, kind: input, shape index: {}]
  %s8 = inlined_call_operand.vmem [shape: f32[1,32], index: 8, kind: input, shape index: {}]
  %s9 = inlined_call_operand.hbm [shape: f32[2,16,32], index: 9, kind: output, shape index: {}]
  %s10 = sld [smem:[#allocation0]]
  $region69: #{tpu_custom_call.1} parent=0
    _
  %s12 = ssub.s32 1, %s10
  %s13 = scalar_select 0, %s12, %s10
  $region1: #{tpu_custom_call.1} parent=0
    #allocation2 [shape = 'u8[16384]{0}', space=vmem, size = 0x4000, scoped, tag = 'output window, operand 0']
    #allocation3 [shape = 's32[2]{0}', space=sflag, size = 0x8, scoped, tag = 'scoped memory for tpu_custom_call.1']
    %14 = vsyncpa [#allocation3], 0
    %s15 = scalar_lea.sflag [#allocation3], 1
    %16 = vsyncpa %s15, 0
    loop: start=0, step=1, limit=4
    $region2: #{tpu_custom_call.1} parent=1 // loop_pre_header
      _
    $region3: #{tpu_custom_call.1} parent=1 // loop_header
      %s18 = sphi 0, %s22
      %p19 = scmp.ge.s32.totalorder %s18, 4
      %s25 = sphi 0, %s37
      %s26 = sphi 0, %s33
      %s27 = sphi 0, %s25
      %s28 = sphi 0, %s26
      %s29 = sphi 0, %s27
      %s30 = sphi 0, %s28
      %s42 = sphi 0, %s44
      %s45 = sphi 0, %s42
      %s46 = sphi 0, %s45
      %s62 = sphi 0, %s46
      %s70 = sphi 0, %s72
      %s73 = sphi 0, %s70
      %s74 = sphi 0, %s73
      %s90 = sphi 0, %s74
      %s98 = sphi 0, %s100
      %s101 = sphi 0, %s98
      %s102 = sphi 0, %s101
      %s118 = sphi 0, %s102
      %s122 = sphi 0, %s122
      %s124 = sphi 0, %s122
      %s125 = sphi 0, %s124
      %s139 = sphi 0, %s125
      %s143 = sphi 0, %s143
      %s145 = sphi 0, %s143
      %s146 = sphi 0, %s145
      %s160 = sphi 0, %s146
      %s164 = sphi 0, %s164
      %s166 = sphi 0, %s164
      %s167 = sphi 0, %s166
      %s181 = sphi 0, %s167
      %s185 = sphi 0, %s185
      %s187 = sphi 0, %s185
      %s188 = sphi 0, %s187
      %s202 = sphi 0, %s188
      %s206 = sphi 0, %s206
      %s208 = sphi 0, %s206
      %s209 = sphi 0, %s208
      %s223 = sphi 0, %s209
      %s227 = sphi 0, %s227
      %s229 = sphi 0, %s227
      %s230 = sphi 0, %s229
      %s244 = sphi 0, %s230
      %s252 = sphi 0, %s254
      %s255 = sphi 0, %s252
      %s256 = sphi 0, %s255
      %s272 = sphi 0, %s256
    $region4: #{tpu_custom_call.1} parent=1 // loop_header_branch
      %21 = sbr.rel (%p19) target = $region8
    $region5: #{tpu_custom_call.1} parent=1 // loop_body
      %s23 = ssub.s32 %s18, 1
      %s24 = ssub.s32 %s18, 2
      %s31 = sadd.s32 1, %s26
      %p32 = scmp.ge.s32.totalorder %s31, 1
      %s33 = scalar_select %p32, 0, %s31
      %s34 = sadd.s32 1, %s25
      %s35 = scalar_select %p32, %s34, %s25
      %p36 = scmp.ge.s32.totalorder %s35, 2
      %s37 = scalar_select %p36, 0, %s35
      %s38 = ssub.s32 %s25, %s37
      %s39 = ssub.s32 %s26, %s33
      %s40 = sor.u32 %s38, %s39
      %p41 = scmp.eq.s32.totalorder %s40, 0
      %s43 = sadd.s32 %s42, 1
      %s44 = scalar_select %p41, %s42, %s43
      %p47 = pneg %p41
      %p48 = scmp.eq.s32.totalorder %s18, 1
      %p49 = por %p47, %p48
      %p50 = scmp.ne.s32.totalorder %s42, %s45
      %p51 = scmp.eq.s32.totalorder %s18, 0
      %p52 = por %p50, %p51
      %p53 = scmp.ne.s32.totalorder %s42, %s45
      %p54 = scmp.eq.s32.totalorder %s23, 1
      %p55 = por %p53, %p54
      %p56 = scmp.ne.s32.totalorder %s45, %s46
      %p57 = scmp.eq.s32.totalorder %s23, 0
      %p58 = por %p56, %p57
      %p59 = scmp.ne.s32.totalorder %s45, %s46
      %p60 = scmp.eq.s32.totalorder %s24, 1
      %p61 = por %p59, %p60
      %p63 = scmp.ne.s32.totalorder %s46, %s62
      %p64 = scmp.eq.s32.totalorder %s24, 0
      %p65 = por %p63, %p64
      %s66 = ssub.s32 %s25, %s37
      %s67 = ssub.s32 %s26, %s33
      %s68 = sor.u32 %s66, %s67
      %p69 = scmp.eq.s32.totalorder %s68, 0
      %s71 = sadd.s32 %s70, 1
      %s72 = scalar_select %p69, %s70, %s71
      %p75 = pneg %p69
      %p76 = scmp.eq.s32.totalorder %s18, 1
      %p77 = por %p75, %p76
      %p78 = scmp.ne.s32.totalorder %s70, %s73
      %p79 = scmp.eq.s32.totalorder %s18, 0
      %p80 = por %p78, %p79
      %p81 = scmp.ne.s32.totalorder %s70, %s73
      %p82 = scmp.eq.s32.totalorder %s23, 1
      %p83 = por %p81, %p82
      %p84 = scmp.ne.s32.totalorder %s73, %s74
      %p85 = scmp.eq.s32.totalorder %s23, 0
      %p86 = por %p84, %p85
      %p87 = scmp.ne.s32.totalorder %s73, %s74
      %p88 = scmp.eq.s32.totalorder %s24, 1
      %p89 = por %p87, %p88
      %p91 = scmp.ne.s32.totalorder %s74, %s90
      %p92 = scmp.eq.s32.totalorder %s24, 0
      %p93 = por %p91, %p92
      %s94 = ssub.s32 %s25, %s37
      %s95 = ssub.s32 %s26, %s33
      %s96 = sor.u32 %s94, %s95
      %p97 = scmp.eq.s32.totalorder %s96, 0
      %s99 = sadd.s32 %s98, 1
      %s100 = scalar_select %p97, %s98, %s99
      %p103 = pneg %p97
      %p104 = scmp.eq.s32.totalorder %s18, 1
      %p105 = por %p103, %p104
      %p106 = scmp.ne.s32.totalorder %s98, %s101
      %p107 = scmp.eq.s32.totalorder %s18, 0
      %p108 = por %p106, %p107
      %p109 = scmp.ne.s32.totalorder %s98, %s101
      %p110 = scmp.eq.s32.totalorder %s23, 1
      %p111 = por %p109, %p110
      %p112 = scmp.ne.s32.totalorder %s101, %s102
      %p113 = scmp.eq.s32.totalorder %s23, 0
      %p114 = por %p112, %p113
      %p115 = scmp.ne.s32.totalorder %s101, %s102
      %p116 = scmp.eq.s32.totalorder %s24, 1
      %p117 = por %p115, %p116
      %p119 = scmp.ne.s32.totalorder %s102, %s118
      %p120 = scmp.eq.s32.totalorder %s24, 0
      %p121 = por %p119, %p120
      %s123 = sadd.s32 %s122, 1
      %p126 = scmp.eq.s32.totalorder %s18, 1
      %p127 = scmp.ne.s32.totalorder %s122, %s124
      %p128 = scmp.eq.s32.totalorder %s18, 0
      %p129 = por %p127, %p128
      %p130 = scmp.ne.s32.totalorder %s122, %s124
      %p131 = scmp.eq.s32.totalorder %s23, 1
      %p132 = por %p130, %p131
      %p133 = scmp.ne.s32.totalorder %s124, %s125
      %p134 = scmp.eq.s32.totalorder %s23, 0
      %p135 = por %p133, %p134
      %p136 = scmp.ne.s32.totalorder %s124, %s125
      %p137 = scmp.eq.s32.totalorder %s24, 1
      %p138 = por %p136, %p137
      %p140 = scmp.ne.s32.totalorder %s125, %s139
      %p141 = scmp.eq.s32.totalorder %s24, 0
      %p142 = por %p140, %p141
      %s144 = sadd.s32 %s143, 1
      %p147 = scmp.eq.s32.totalorder %s18, 1
      %p148 = scmp.ne.s32.totalorder %s143, %s145
      %p149 = scmp.eq.s32.totalorder %s18, 0
      %p150 = por %p148, %p149
      %p151 = scmp.ne.s32.totalorder %s143, %s145
      %p152 = scmp.eq.s32.totalorder %s23, 1
      %p153 = por %p151, %p152
      %p154 = scmp.ne.s32.totalorder %s145, %s146
      %p155 = scmp.eq.s32.totalorder %s23, 0
      %p156 = por %p154, %p155
      %p157 = scmp.ne.s32.totalorder %s145, %s146
      %p158 = scmp.eq.s32.totalorder %s24, 1
      %p159 = por %p157, %p158
      %p161 = scmp.ne.s32.totalorder %s146, %s160
      %p162 = scmp.eq.s32.totalorder %s24, 0
      %p163 = por %p161, %p162
      %s165 = sadd.s32 %s164, 1
      %p168 = scmp.eq.s32.totalorder %s18, 1
      %p169 = scmp.ne.s32.totalorder %s164, %s166
      %p170 = scmp.eq.s32.totalorder %s18, 0
      %p171 = por %p169, %p170
      %p172 = scmp.ne.s32.totalorder %s164, %s166
      %p173 = scmp.eq.s32.totalorder %s23, 1
      %p174 = por %p172, %p173
      %p175 = scmp.ne.s32.totalorder %s166, %s167
      %p176 = scmp.eq.s32.totalorder %s23, 0
      %p177 = por %p175, %p176
      %p178 = scmp.ne.s32.totalorder %s166, %s167
      %p179 = scmp.eq.s32.totalorder %s24, 1
      %p180 = por %p178, %p179
      %p182 = scmp.ne.s32.totalorder %s167, %s181
      %p183 = scmp.eq.s32.totalorder %s24, 0
      %p184 = por %p182, %p183
      %s186 = sadd.s32 %s185, 1
      %p189 = scmp.eq.s32.totalorder %s18, 1
      %p190 = scmp.ne.s32.totalorder %s185, %s187
      %p191 = scmp.eq.s32.totalorder %s18, 0
      %p192 = por %p190, %p191
      %p193 = scmp.ne.s32.totalorder %s185, %s187
      %p194 = scmp.eq.s32.totalorder %s23, 1
      %p195 = por %p193, %p194
      %p196 = scmp.ne.s32.totalorder %s187, %s188
      %p197 = scmp.eq.s32.totalorder %s23, 0
      %p198 = por %p196, %p197
      %p199 = scmp.ne.s32.totalorder %s187, %s188
      %p200 = scmp.eq.s32.totalorder %s24, 1
      %p201 = por %p199, %p200
      %p203 = scmp.ne.s32.totalorder %s188, %s202
      %p204 = scmp.eq.s32.totalorder %s24, 0
      %p205 = por %p203, %p204
      %s207 = sadd.s32 %s206, 1
      %p210 = scmp.eq.s32.totalorder %s18, 1
      %p211 = scmp.ne.s32.totalorder %s206, %s208
      %p212 = scmp.eq.s32.totalorder %s18, 0
      %p213 = por %p211, %p212
      %p214 = scmp.ne.s32.totalorder %s206, %s208
      %p215 = scmp.eq.s32.totalorder %s23, 1
      %p216 = por %p214, %p215
      %p217 = scmp.ne.s32.totalorder %s208, %s209
      %p218 = scmp.eq.s32.totalorder %s23, 0
      %p219 = por %p217, %p218
      %p220 = scmp.ne.s32.totalorder %s208, %s209
      %p221 = scmp.eq.s32.totalorder %s24, 1
      %p222 = por %p220, %p221
      %p224 = scmp.ne.s32.totalorder %s209, %s223
      %p225 = scmp.eq.s32.totalorder %s24, 0
      %p226 = por %p224, %p225
      %s228 = sadd.s32 %s227, 1
      %p231 = scmp.eq.s32.totalorder %s18, 1
      %p232 = scmp.ne.s32.totalorder %s227, %s229
      %p233 = scmp.eq.s32.totalorder %s18, 0
      %p234 = por %p232, %p233
      %p235 = scmp.ne.s32.totalorder %s227, %s229
      %p236 = scmp.eq.s32.totalorder %s23, 1
      %p237 = por %p235, %p236
      %p238 = scmp.ne.s32.totalorder %s229, %s230
      %p239 = scmp.eq.s32.totalorder %s23, 0
      %p240 = por %p238, %p239
      %p241 = scmp.ne.s32.totalorder %s229, %s230
      %p242 = scmp.eq.s32.totalorder %s24, 1
      %p243 = por %p241, %p242
      %p245 = scmp.ne.s32.totalorder %s230, %s244
      %p246 = scmp.eq.s32.totalorder %s24, 0
      %p247 = por %p245, %p246
      %s248 = ssub.s32 %s25, %s37
      %s249 = ssub.s32 %s26, %s33
      %s250 = sor.u32 %s248, %s249
      %p251 = scmp.eq.s32.totalorder %s250, 0
      %s253 = sadd.s32 %s252, 1
      %s254 = scalar_select %p251, %s252, %s253
      %p257 = pneg %p251
      %p258 = scmp.eq.s32.totalorder %s18, 1
      %p259 = por %p257, %p258
      %p260 = scmp.ne.s32.totalorder %s252, %s255
      %p261 = scmp.eq.s32.totalorder %s18, 0
      %p262 = por %p260, %p261
      %p263 = scmp.ne.s32.totalorder %s252, %s255
      %p264 = scmp.eq.s32.totalorder %s23, 1
      %p265 = por %p263, %p264
      %p266 = scmp.ne.s32.totalorder %s255, %s256
      %p267 = scmp.eq.s32.totalorder %s23, 0
      %p268 = por %p266, %p267
      %p269 = scmp.ne.s32.totalorder %s255, %s256
      %p270 = scmp.eq.s32.totalorder %s24, 1
      %p271 = por %p269, %p270
      %p273 = scmp.ne.s32.totalorder %s256, %s272
      %p274 = scmp.eq.s32.totalorder %s24, 0
      %p275 = por %p273, %p274
      %p276 = scmp.le.s32.totalorder 1, %s18
      %p277 = scmp.lt.s32.totalorder %s18, 3
      %p278 = pnand %p276, %p277
      %p279 = pneg %p278
      // Predicated region
      $region9: #{tpu_custom_call.1} parent=5 // pred_check
        _
      $region10: #{tpu_custom_call.1} parent=5 // pred_check_branch
        %281 = sbr.rel (%p278) target = $region12
      $region11: #{tpu_custom_call.1} parent=5 // pred_region
        %s282 = ssub.s32 %s18, 1
        // Predicated region
        $region13: #{tpu_custom_call.1} parent=11 // pred_check
          %p283 = pneg %p135
        $region14: #{tpu_custom_call.1} parent=11 // pred_check_branch
          %285 = sbr.rel (%p283) target = $region16
        $region15: #{tpu_custom_call.1} parent=11 // pred_region
          _
        $region16: #{tpu_custom_call.1} parent=11 // pred_fallthru
          _
        // Predicated region
        $region17: #{tpu_custom_call.1} parent=11 // pred_check
          %p286 = pneg %p156
        $region18: #{tpu_custom_call.1} parent=11 // pred_check_branch
          %288 = sbr.rel (%p286) target = $region20
        $region19: #{tpu_custom_call.1} parent=11 // pred_region
          _
        $region20: #{tpu_custom_call.1} parent=11 // pred_fallthru
          _
        // Predicated region
        $region21: #{tpu_custom_call.1} parent=11 // pred_check
          %p289 = pneg %p177
        $region22: #{tpu_custom_call.1} parent=11 // pred_check_branch
          %291 = sbr.rel (%p289) target = $region24
        $region23: #{tpu_custom_call.1} parent=11 // pred_region
          _
        $region24: #{tpu_custom_call.1} parent=11 // pred_fallthru
          _
        // Predicated region
        $region25: #{tpu_custom_call.1} parent=11 // pred_check
          %p292 = pneg %p198
        $region26: #{tpu_custom_call.1} parent=11 // pred_check_branch
          %294 = sbr.rel (%p292) target = $region28
        $region27: #{tpu_custom_call.1} parent=11 // pred_region
          _
        $region28: #{tpu_custom_call.1} parent=11 // pred_fallthru
          _
        // Predicated region
        $region29: #{tpu_custom_call.1} parent=11 // pred_check
          %p295 = pneg %p219
        $region30: #{tpu_custom_call.1} parent=11 // pred_check_branch
          %297 = sbr.rel (%p295) target = $region32
        $region31: #{tpu_custom_call.1} parent=11 // pred_region
          _
        $region32: #{tpu_custom_call.1} parent=11 // pred_fallthru
          _
        // Predicated region
        $region33: #{tpu_custom_call.1} parent=11 // pred_check
          %p298 = pneg %p240
        $region34: #{tpu_custom_call.1} parent=11 // pred_check_branch
          %300 = sbr.rel (%p298) target = $region36
        $region35: #{tpu_custom_call.1} parent=11 // pred_region
          _
        $region36: #{tpu_custom_call.1} parent=11 // pred_fallthru
          _
      $region12: #{tpu_custom_call.1} parent=5 // pred_fallthru
        _
      %p301 = scmp.lt.s32.totalorder %s18, 2
      // Predicated region
      $region37: #{tpu_custom_call.1} parent=5 // pred_check
        %p302 = pneg %p301
      $region38: #{tpu_custom_call.1} parent=5 // pred_check_branch
        %304 = sbr.rel (%p302) target = $region40
      $region39: #{tpu_custom_call.1} parent=5 // pred_region
        // Predicated region
        $region41: #{tpu_custom_call.1} parent=39 // pred_check
          %p305 = pneg %p52
        $region42: #{tpu_custom_call.1} parent=39 // pred_check_branch
          %307 = sbr.rel (%p305) target = $region44
        $region43: #{tpu_custom_call.1} parent=39 // pred_region
          %s308 = smul.u32 2, %s26
          %p309 = scmp.lt.s32.totalorder %s25, 1
          %s310 = scalar_select %p309, %s25, 1
          %p311 = scmp.lt.s32.totalorder %s308, 1
          %s312 = scalar_select %p311, %s308, 1
          %s313 = smul.addr %s310, 2
          %s314 = sadd.s32 %s312, %s313
          %s315 = smul.addr %s314, 8
          %s316 = scalar_lea.vmem %s0, %s315
          %s317 = smul.u32 2, %s26
        $region44: #{tpu_custom_call.1} parent=39 // pred_fallthru
          _
        // Predicated region
        $region45: #{tpu_custom_call.1} parent=39 // pred_check
          %p318 = pneg %p80
        $region46: #{tpu_custom_call.1} parent=39 // pred_check_branch
          %320 = sbr.rel (%p318) target = $region48
        $region47: #{tpu_custom_call.1} parent=39 // pred_region
          %p321 = scmp.lt.s32.totalorder %s25, 1
          %s322 = scalar_select %p321, %s25, 1
          %p323 = scmp.lt.s32.totalorder %s26, 0
          %s324 = scalar_select %p323, %s26, 0
          %s325 = sadd.s32 %s324, %s322
          %s326 = smul.addr %s325, 2
          %s327 = scalar_lea.vmem %s1, %s326
        $region48: #{tpu_custom_call.1} parent=39 // pred_fallthru
          _
        // Predicated region
        $region49: #{tpu_custom_call.1} parent=39 // pred_check
          %p328 = pneg %p108
        $region50: #{tpu_custom_call.1} parent=39 // pred_check_branch
          %330 = sbr.rel (%p328) target = $region52
        $region51: #{tpu_custom_call.1} parent=39 // pred_region
          %p331 = scmp.lt.s32.totalorder %s25, 1
          %s332 = scalar_select %p331, %s25, 1
          %p333 = scmp.lt.s32.totalorder %s26, 0
          %s334 = scalar_select %p333, %s26, 0
          %s335 = sadd.s32 %s334, %s332
          %s336 = smul.addr %s335, 2
          %s337 = scalar_lea.vmem %s2, %s336
        $region52: #{tpu_custom_call.1} parent=39 // pred_fallthru
          _
      $region40: #{tpu_custom_call.1} parent=5 // pred_fallthru
        _
      %p338 = scmp.le.s32.totalorder 1, %s18
      %p339 = scmp.lt.s32.totalorder %s18, 3
      %p340 = pnand %p338, %p339
      %p341 = pneg %p340
      // Predicated region
      $region53: #{tpu_custom_call.1} parent=5 // pred_check
        _
      $region54: #{tpu_custom_call.1} parent=5 // pred_check_branch
        %343 = sbr.rel (%p340) target = $region56
      $region55: #{tpu_custom_call.1} parent=5 // pred_region
        %s344 = ssub.s32 %s18, 1
        %s345 = smul.u32 2, %s28
        %p346 = scmp.lt.s32.totalorder %s27, 1
        %s347 = scalar_select %p346, %s27, 1
        %p348 = scmp.lt.s32.totalorder %s345, 1
        %s349 = scalar_select %p348, %s345, 1
        %s350 = smul.addr %s347, 2
        %s351 = sadd.s32 %s349, %s350
        %s352 = smul.addr %s351, 8
        %s353 = scalar_lea.vmem %s0, %s352
        %p354 = pneg %p58
        %p355 = pneg %p55
        %p356 = scmp.lt.s32.totalorder %s27, 1
        %s357 = scalar_select %p356, %s27, 1
        %p358 = scmp.lt.s32.totalorder %s28, 0
        %s359 = scalar_select %p358, %s28, 0
        %s360 = sadd.s32 %s359, %s357
        %s361 = smul.addr %s360, 2
        %s362 = scalar_lea.vmem %s1, %s361
        %p363 = pneg %p86
        %p364 = pneg %p83
        %p365 = scmp.lt.s32.totalorder %s27, 1
        %s366 = scalar_select %p365, %s27, 1
        %p367 = scmp.lt.s32.totalorder %s28, 0
        %s368 = scalar_select %p367, %s28, 0
        %s369 = sadd.s32 %s368, %s366
        %s370 = smul.addr %s369, 2
        %s371 = scalar_lea.vmem %s2, %s370
        %p372 = pneg %p114
        %p373 = pneg %p111
        %p374 = pneg %p135
        %p375 = pneg %p132
        %p376 = pneg %p156
        %p377 = pneg %p153
        %p378 = pneg %p177
        %p379 = pneg %p174
        %p380 = pneg %p198
        %p381 = pneg %p195
        %p382 = pneg %p219
        %p383 = pneg %p216
        %p384 = pneg %p240
        %p385 = pneg %p237
        %p386 = pneg %p268
        %p387 = pneg %p265
        %s388 = sand.u32 %s255, 1
        %s389 = scalar_lea.sflag [#allocation3], %s388
        %s390 = sand.u32 %s255, 1
        %s391 = smul.addr %s390, 16
        %s392 = scalar_lea.vmem [#allocation2], %s391
        %s393 = smul.u32 2, %s28
        %p394 = scmp.lt.s32.totalorder %s27, 1
        %s395 = scalar_select %p394, %s27, 1
        %p396 = scmp.lt.s32.totalorder %s393, 1
        %s397 = scalar_select %p396, %s393, 1
        %s398 = smul.addr %s395, 2
        %s399 = sadd.s32 %s397, %s398
        %s400 = smul.addr %s399, 8
        %s401 = scalar_lea.vmem %s0, %s400
        %s402 = smul.u32 2, %s28
        %p403 = scmp.lt.s32.totalorder %s27, 1
        %s404 = scalar_select %p403, %s27, 1
        %p405 = scmp.lt.s32.totalorder %s28, 0
        %s406 = scalar_select %p405, %s28, 0
        %s407 = sadd.s32 %s406, %s404
        %s408 = smul.addr %s407, 2
        %s409 = scalar_lea.vmem %s1, %s408
        %p410 = scmp.lt.s32.totalorder %s27, 1
        %s411 = scalar_select %p410, %s27, 1
        %p412 = scmp.lt.s32.totalorder %s28, 0
        %s413 = scalar_select %p412, %s28, 0
        %s414 = sadd.s32 %s413, %s411
        %s415 = smul.addr %s414, 2
        %s416 = scalar_lea.vmem %s2, %s415
        %s417 = smul.u32 2, %s28
        %s419 = smul.u32 %s28, 16
        %v420 = vld [vmem:[%s409] sm:$0x3]
        %v421 = vld [vmem:[%s401] sm:$0xff]
        %v422 = vld [vmem:[%s401 + $0x8] sm:$0xff]
        %v423 = vld [vmem:[%s416] sm:$0x3]
        %vm426 = vcmask 1041408
        %v427 = vrot.slane %v421, 6
        %v428 = vrot.slane %v422, 6
        %v429 = vsel %vm426, %v427, %v428
        %v434 = vrot.slane %v423, 6
        %v436 = vsel %vm426, %v420, %v427
        %v437 = vsel %vm426, %v428, %v434
        %v438 = vpack.c.bf16 %v429, %v436
        %v439 = vpack.c.bf16 %v437, %v437
        %v440 = vld [vmem:[%s3] sm:$0xf]
        %v441 = vld [vmem:[%s3 + $0x4] sm:$0xf]
        %v442 = vld [vmem:[%s3 + $0x8] sm:$0xf]
        %v443 = vld [vmem:[%s3 + $0xc] sm:$0xf]
        %s444 = scalar_lea.vmem %s3, 16
        %v445 = vld [vmem:[%s444] sm:$0xf]
        %v446 = vld [vmem:[%s444 + $0x4] sm:$0xf]
        %v447 = vld [vmem:[%s444 + $0x8] sm:$0xf]
        %v448 = vld [vmem:[%s444 + $0xc] sm:$0xf]
        %vm449 = vsmask.f32 7424
        %v451 = vshrl.u32 %v438, 16
        %v453 = vshll.u32 %v438, 16
        %v455 = vrot.slane %v453, 1
        %v456 = vor.u32 %v451, %v455
        %v458 = vshll.u32 %v439, 16
        %v460 = vrot.slane %v458, 1
        %v461 = vsel %vm449, %v456, %v460
        %v462 = vshrl.u32 %v439, 16
        %v464 = vor.u32 %v462, %v460
        %v469 = vunpack.c.l.b16 %v445
        %v470 = vunpack.c.l.b16 %v446
        %v471 = vunpack.c.l.b16 %v447
        %v472 = vunpack.c.l.b16 %v448
        %v473 = vpack.c.b16 %v470, %v469
        %v474 = vpack.c.b16 %v472, %v471
        %vm477 = vcmask 261120
        %v479 = vsel %vm477, %v461, 0
        %v482 = vsel %vm477, %v464, 0
        %484 = vmatpush.bf16.msra.mxu0 0
        %485 = vmatpush.bf16.msra.mxu0 0
        %486 = vmatpush.bf16.msra.mxu0 0
        %487 = vmatpush.bf16.msra.mxu0 0
        %488 = vmatpush.bf16.msra.mxu0 0
        %489 = vmatpush.bf16.msra.mxu0 0
        %490 = vmatpush.bf16.msra.mxu0 %v474
        %491 = vmatpush.bf16.msra.mxu0 %v473
        %492 = vmatmul.bf16.gmra.mxu0 %v479
        %v493 = vpop.f32.mrf.mxu0
        %v494 = vadd.f32 0.0, %v493
        %v495 = vpop.f32.mrf.mxu0
        %v496 = vadd.f32 0.0, %v495
        %497 = vmatmul.bf16.gmra.mxu0 %v482
        %v498 = vpop.f32.mrf.mxu0
        %v499 = vadd.f32 0.0, %v498
        %v500 = vpop.f32.mrf.mxu0
        %501 = vdwg.mxu0
        %v506 = vunpack.c.l.b16 %v440
        %v507 = vunpack.c.l.b16 %v441
        %v508 = vunpack.c.l.b16 %v442
        %v509 = vunpack.c.l.b16 %v443
        %v510 = vpack.c.b16 %v507, %v506
        %v511 = vpack.c.b16 %v509, %v508
        %v514 = vsel %vm477, %v438, 0
        %v516 = vsel %vm477, %v439, 0
        %518 = vmatpush.bf16.msra.mxu0 0
        %519 = vmatpush.bf16.msra.mxu0 0
        %520 = vmatpush.bf16.msra.mxu0 0
        %521 = vmatpush.bf16.msra.mxu0 0
        %522 = vmatpush.bf16.msra.mxu0 0
        %523 = vmatpush.bf16.msra.mxu0 0
        %524 = vmatpush.bf16.msra.mxu0 %v511
        %525 = vmatpush.bf16.msra.mxu0 %v510
        %526 = vmatmul.bf16.gmra.mxu0 %v514
        %v527 = vpop.f32.mrf.mxu0
        %v528 = vadd.f32 %v494, %v527
        %v529 = vpop.f32.mrf.mxu0
        %v530 = vadd.f32 %v496, %v529
        %531 = vmatmul.bf16.gmra.mxu0 %v516
        %v532 = vpop.f32.mrf.mxu0
        %v533 = vadd.f32 %v499, %v532
        %v534 = vpop.f32.mrf.mxu0
        %535 = vdwg.mxu0
        %s536 = scalar_lea.vmem %s3, 32
        %v537 = vld [vmem:[%s536] sm:$0xf]
        %v538 = vld [vmem:[%s536 + $0x4] sm:$0xf]
        %v539 = vld [vmem:[%s536 + $0x8] sm:$0xf]
        %v540 = vld [vmem:[%s536 + $0xc] sm:$0xf]
        %vm543 = vcmask 1046528
        %v544 = vrot.slane %v438, 1
        %v545 = vrot.slane %v439, 1
        %v546 = vsel %vm543, %v544, %v545
        %v551 = vunpack.c.l.b16 %v537
        %v552 = vunpack.c.l.b16 %v538
        %v553 = vunpack.c.l.b16 %v539
        %v554 = vunpack.c.l.b16 %v540
        %v555 = vpack.c.b16 %v552, %v551
        %v556 = vpack.c.b16 %v554, %v553
        %v560 = vsel %vm477, %v546, 0
        %v563 = vsel %vm477, %v545, 0
        %565 = vmatpush.bf16.msra.mxu0 0
        %566 = vmatpush.bf16.msra.mxu0 0
        %567 = vmatpush.bf16.msra.mxu0 0
        %568 = vmatpush.bf16.msra.mxu0 0
        %569 = vmatpush.bf16.msra.mxu0 0
        %570 = vmatpush.bf16.msra.mxu0 0
        %571 = vmatpush.bf16.msra.mxu0 %v556
        %572 = vmatpush.bf16.msra.mxu0 %v555
        %573 = vmatmul.bf16.gmra.mxu0 %v560
        %v574 = vpop.f32.mrf.mxu0
        %v575 = vadd.f32 0.0, %v574
        %v576 = vpop.f32.mrf.mxu0
        %v577 = vadd.f32 0.0, %v576
        %578 = vmatmul.bf16.gmra.mxu0 %v563
        %v579 = vpop.f32.mrf.mxu0
        %v580 = vadd.f32 0.0, %v579
        %v581 = vpop.f32.mrf.mxu0
        %582 = vdwg.mxu0
        %v583 = vadd.f32 %v528, %v575
        %v584 = vadd.f32 %v530, %v577
        %v585 = vadd.f32 %v533, %v580
        %v586 = vld [vmem:[%s4] sm:$0x1]
        %v588 = vperm.slane %v586, 0
        %v590 = vadd.f32 %v583, %v588
        %v591 = vadd.f32 %v584, %v588
        %v592 = vadd.f32 %v585, %v588
        %v593 = vmax.f32 %v590, 0.0
        %v594 = vmax.f32 %v591, 0.0
        %v595 = vmax.f32 %v592, 0.0
        %s596 = ssub.s32 %s419, 1
        %v597 = vlaneseq
        %v598 = vshrl.u32 %v597, 7
        %v599 = vadd.s32 %v598, 8
        %v600 = vadd.s32 %v598, 16
        %v601 = vstv %s596
        %v602 = vadd.s32 %v601, %v598
        %v603 = vadd.s32 %v601, %v599
        %v604 = vadd.s32 %v601, %v600
        %vm605 = vcmp.ge.s32.totalorder %v602, 0
        %vm606 = vcmp.ge.s32.totalorder %v603, 0
        %vm607 = vcmp.ge.s32.totalorder %v604, 0
        %vm608 = vcmp.lt.s32.totalorder %v602, 16
        %vm609 = vcmp.lt.s32.totalorder %v603, 16
        %vm610 = vcmp.lt.s32.totalorder %v604, 16
        %vm611 = vmand %vm605, %vm608
        %vm612 = vmand %vm606, %vm609
        %vm613 = vmand %vm607, %vm610
        %v614 = vsel %vm611, 1, 0
        %v615 = vsel %vm612, 1, 0
        %v616 = vsel %vm613, 1, 0
        %vm617 = vcmp.eq.s32.totalorder %v614, 1
        %vm618 = vcmp.eq.s32.totalorder %v615, 1
        %vm619 = vcmp.eq.s32.totalorder %v616, 1
        %v620 = vsel %vm617, %v593, 0.0
        %v621 = vsel %vm618, %v594, 0.0
        %v622 = vsel %vm619, %v595, 0.0
        %v623 = vpack.c.bf16 %v621, %v620
        %v624 = vpack.c.bf16 %v622, %v622
        %v625 = vld [vmem:[%s5] sm:$0xf]
        %v626 = vld [vmem:[%s5 + $0x4] sm:$0xf]
        %v627 = vld [vmem:[%s5 + $0x8] sm:$0xf]
        %v628 = vld [vmem:[%s5 + $0xc] sm:$0xf]
        %v629 = vld [vmem:[%s5 + $0x10] sm:$0xf]
        %v630 = vld [vmem:[%s5 + $0x14] sm:$0xf]
        %v631 = vld [vmem:[%s5 + $0x18] sm:$0xf]
        %v632 = vld [vmem:[%s5 + $0x1c] sm:$0xf]
        %v641 = vunpack.c.l.b16 %v625
        %v642 = vunpack.c.l.b16 %v626
        %v643 = vunpack.c.l.b16 %v627
        %v644 = vunpack.c.l.b16 %v628
        %v645 = vunpack.c.l.b16 %v629
        %v646 = vunpack.c.l.b16 %v630
        %v647 = vunpack.c.l.b16 %v631
        %v648 = vunpack.c.l.b16 %v632
        %v649 = vpack.c.b16 %v642, %v641
        %v650 = vpack.c.b16 %v644, %v643
        %v651 = vpack.c.b16 %v646, %v645
        %v652 = vpack.c.b16 %v648, %v647
        %vm657 = vcmask 523264
        %v659 = vsel %vm657, %v623, 0
        %v662 = vsel %vm657, %v624, 0
        %664 = vmatpush.bf16.msra.mxu0 0
        %665 = vmatpush.bf16.msra.mxu0 0
        %666 = vmatpush.bf16.msra.mxu0 0
        %667 = vmatpush.bf16.msra.mxu0 0
        %668 = vmatpush.bf16.msra.mxu0 %v652
        %669 = vmatpush.bf16.msra.mxu0 %v651
        %670 = vmatpush.bf16.msra.mxu0 %v650
        %671 = vmatpush.bf16.msra.mxu0 %v649
        %672 = vmatmul.bf16.gmra.mxu0 %v659
        %v673 = vpop.f32.mrf.mxu0
        %v674 = vadd.f32 0.0, %v673
        %v675 = vpop.f32.mrf.mxu0
        %v676 = vadd.f32 0.0, %v675
        %677 = vmatmul.bf16.gmra.mxu0 %v662
        %v678 = vpop.f32.mrf.mxu0
        %v679 = vpop.f32.mrf.mxu0
        %680 = vdwg.mxu0
        %v681 = vadd.f32 %v674, 0.0
        %v682 = vadd.f32 %v676, 0.0
        %s683 = scalar_lea.vmem %s5, 32
        %v684 = vld [vmem:[%s683] sm:$0xf]
        %v685 = vld [vmem:[%s683 + $0x4] sm:$0xf]
        %v686 = vld [vmem:[%s683 + $0x8] sm:$0xf]
        %v687 = vld [vmem:[%s683 + $0xc] sm:$0xf]
        %v688 = vld [vmem:[%s683 + $0x10] sm:$0xf]
        %v689 = vld [vmem:[%s683 + $0x14] sm:$0xf]
        %v690 = vld [vmem:[%s683 + $0x18] sm:$0xf]
        %v691 = vld [vmem:[%s683 + $0x1c] sm:$0xf]
        %v700 = vunpack.c.l.b16 %v684
        %v701 = vunpack.c.l.b16 %v685
        %v702 = vunpack.c.l.b16 %v686
        %v703 = vunpack.c.l.b16 %v687
        %v704 = vunpack.c.l.b16 %v688
        %v705 = vunpack.c.l.b16 %v689
        %v706 = vunpack.c.l.b16 %v690
        %v707 = vunpack.c.l.b16 %v691
        %v708 = vpack.c.b16 %v701, %v700
        %v709 = vpack.c.b16 %v703, %v702
        %v710 = vpack.c.b16 %v705, %v704
        %v711 = vpack.c.b16 %v707, %v706
        %716 = vmatpush.bf16.msra.mxu0 0
        %717 = vmatpush.bf16.msra.mxu0 0
        %718 = vmatpush.bf16.msra.mxu0 0
        %719 = vmatpush.bf16.msra.mxu0 0
        %720 = vmatpush.bf16.msra.mxu0 %v711
        %721 = vmatpush.bf16.msra.mxu0 %v710
        %722 = vmatpush.bf16.msra.mxu0 %v709
        %723 = vmatpush.bf16.msra.mxu0 %v708
        %724 = vmatmul.bf16.gmra.mxu0 %v659
        %v725 = vpop.f32.mrf.mxu0
        %v726 = vadd.f32 0.0, %v725
        %v727 = vpop.f32.mrf.mxu0
        %v728 = vadd.f32 0.0, %v727
        %729 = vmatmul.bf16.gmra.mxu0 %v662
        %v730 = vpop.f32.mrf.mxu0
        %v731 = vadd.f32 0.0, %v730
        %v732 = vpop.f32.mrf.mxu0
        %733 = vdwg.mxu0
        %vm737 = vcmask 1046528
        %v738 = vrot.slane %v726, 1
        %v739 = vrot.slane %v728, 1
        %v740 = vsel %vm737, %v738, %v739
        %v741 = vrot.slane %v731, 1
        %v742 = vsel %vm737, %v739, %v741
        %v745 = vadd.f32 %v681, %v740
        %v746 = vadd.f32 %v682, %v742
        %s747 = scalar_lea.vmem %s5, 64
        %v748 = vld [vmem:[%s747] sm:$0xf]
        %v749 = vld [vmem:[%s747 + $0x4] sm:$0xf]
        %v750 = vld [vmem:[%s747 + $0x8] sm:$0xf]
        %v751 = vld [vmem:[%s747 + $0xc] sm:$0xf]
        %v752 = vld [vmem:[%s747 + $0x10] sm:$0xf]
        %v753 = vld [vmem:[%s747 + $0x14] sm:$0xf]
        %v754 = vld [vmem:[%s747 + $0x18] sm:$0xf]
        %v755 = vld [vmem:[%s747 + $0x1c] sm:$0xf]
        %v764 = vunpack.c.l.b16 %v748
        %v765 = vunpack.c.l.b16 %v749
        %v766 = vunpack.c.l.b16 %v750
        %v767 = vunpack.c.l.b16 %v751
        %v768 = vunpack.c.l.b16 %v752
        %v769 = vunpack.c.l.b16 %v753
        %v770 = vunpack.c.l.b16 %v754
        %v771 = vunpack.c.l.b16 %v755
        %v772 = vpack.c.b16 %v765, %v764
        %v773 = vpack.c.b16 %v767, %v766
        %v774 = vpack.c.b16 %v769, %v768
        %v775 = vpack.c.b16 %v771, %v770
        %780 = vmatpush.bf16.msra.mxu0 0
        %781 = vmatpush.bf16.msra.mxu0 0
        %782 = vmatpush.bf16.msra.mxu0 0
        %783 = vmatpush.bf16.msra.mxu0 0
        %784 = vmatpush.bf16.msra.mxu0 %v775
        %785 = vmatpush.bf16.msra.mxu0 %v774
        %786 = vmatpush.bf16.msra.mxu0 %v773
        %787 = vmatpush.bf16.msra.mxu0 %v772
        %788 = vmatmul.bf16.gmra.mxu0 %v659
        %v789 = vpop.f32.mrf.mxu0
        %v790 = vadd.f32 0.0, %v789
        %v791 = vpop.f32.mrf.mxu0
        %v792 = vadd.f32 0.0, %v791
        %793 = vmatmul.bf16.gmra.mxu0 %v662
        %v794 = vpop.f32.mrf.mxu0
        %v795 = vadd.f32 0.0, %v794
        %v796 = vpop.f32.mrf.mxu0
        %797 = vdwg.mxu0
        %vm801 = vcmask 1045504
        %v802 = vrot.slane %v790, 2
        %v803 = vrot.slane %v792, 2
        %v804 = vsel %vm801, %v802, %v803
        %v805 = vrot.slane %v795, 2
        %v806 = vsel %vm801, %v803, %v805
        %v809 = vadd.f32 %v745, %v804
        %v810 = vadd.f32 %v746, %v806
        %v811 = vld [vmem:[%s6] sm:$0x1]
        %v813 = vperm.slane %v811, 0
        %v815 = vadd.f32 %v809, %v813
        %v816 = vadd.f32 %v810, %v813
        %v819 = vrot.slane %v815, 6
        %v820 = vrot.slane %v816, 6
        %v821 = vsel %vm426, %v819, %v820
        %v825 = vadd.f32 %v436, %v819
        %v826 = vadd.f32 %v429, %v821
        %v827 = vadd.f32 %v437, %v820
        %vm828 = vcmask 261122
        %v829 = vsel %vm828, %v825, 0.0
        %830 = vadd.xlane.f32.xlu0 %v829
        %v831 = vpop.xlane.xlu0 %830
        %v832 = vsel %vm477, %v826, 0.0
        %833 = vadd.xlane.f32.xlu0 %v832
        %v834 = vpop.xlane.xlu0 %833
        %vm835 = vcmask 254976
        %v836 = vsel %vm835, %v827, 0.0
        %837 = vadd.xlane.f32.xlu0 %v836
        %v838 = vpop.xlane.xlu0 %837
        %v839 = vrcp.pop 32.0
        %v840 = vmul.f32 32.0, %v839
        %v841 = vsub.f32 1.0, %v840
        %v842 = vmul.f32 %v839, %v841
        %v843 = vadd.f32 %v839, %v842
        %vm844 = vweird.f32 %v839
        %v845 = vsel %vm844, %v839, %v843
        %v846 = vmul.f32 %v831, %v845
        %v847 = vmul.f32 %v834, %v845
        %v848 = vmul.f32 %v838, %v845
        %v849 = vsub.f32 %v825, %v846
        %v850 = vsub.f32 %v826, %v847
        %v851 = vsub.f32 %v827, %v848
        %v852 = vmul.f32 %v849, %v849
        %v853 = vmul.f32 %v850, %v850
        %v854 = vmul.f32 %v851, %v851
        %v855 = vsel %vm828, %v852, 0.0
        %856 = vadd.xlane.f32.xlu0 %v855
        %v857 = vpop.xlane.xlu0 %856
        %v858 = vsel %vm477, %v853, 0.0
        %859 = vadd.xlane.f32.xlu0 %v858
        %v860 = vpop.xlane.xlu0 %859
        %v861 = vsel %vm835, %v854, 0.0
        %862 = vadd.xlane.f32.xlu0 %v861
        %v863 = vpop.xlane.xlu0 %862
        %v864 = vmul.f32 %v857, %v845
        %v865 = vmul.f32 %v860, %v845
        %v866 = vmul.f32 %v863, %v845
        %v867 = vadd.f32 %v864, 1e-05
        %v868 = vadd.f32 %v865, 1e-05
        %v869 = vadd.f32 %v866, 1e-05
        %v870 = vrsqrt.pop %v867
        %v871 = vmul.f32 %v870, %v867
        %v872 = vmul.f32 %v871, %v870
        %v873 = vmul.f32 0.5, %v872
        %v874 = vsub.f32 1.5, %v873
        %v875 = vmul.f32 %v870, %v874
        %vm876 = vweird.f32 %v867
        %vm877 = vweird.f32 %v870
        %vm878 = vmor %vm876, %vm877
        %v879 = vsel %vm878, %v870, %v875
        %v880 = vrsqrt.pop %v868
        %v881 = vmul.f32 %v880, %v868
        %v882 = vmul.f32 %v881, %v880
        %v883 = vmul.f32 0.5, %v882
        %v884 = vsub.f32 1.5, %v883
        %v885 = vmul.f32 %v880, %v884
        %vm886 = vweird.f32 %v868
        %vm887 = vweird.f32 %v880
        %vm888 = vmor %vm886, %vm887
        %v889 = vsel %vm888, %v880, %v885
        %v890 = vrsqrt.pop %v869
        %v891 = vmul.f32 %v890, %v869
        %v892 = vmul.f32 %v891, %v890
        %v893 = vmul.f32 0.5, %v892
        %v894 = vsub.f32 1.5, %v893
        %v895 = vmul.f32 %v890, %v894
        %vm896 = vweird.f32 %v869
        %vm897 = vweird.f32 %v890
        %vm898 = vmor %vm896, %vm897
        %v899 = vsel %vm898, %v890, %v895
        %v900 = vmul.f32 %v849, %v879
        %v901 = vmul.f32 %v850, %v889
        %v902 = vmul.f32 %v851, %v899
        %v903 = vld [vmem:[%s7] sm:$0x1]
        %v905 = vperm.slane %v903, 0
        %v907 = vmul.f32 %v900, %v905
        %v908 = vmul.f32 %v901, %v905
        %v909 = vmul.f32 %v902, %v905
        %v910 = vld [vmem:[%s8] sm:$0x1]
        %v912 = vperm.slane %v910, 0
        %v914 = vadd.f32 %v907, %v912
        %v915 = vadd.f32 %v908, %v912
        %v916 = vadd.f32 %v909, %v912
        %917 = vst.msk [vmem:[%s392 - $0x2] sm:$0xfc] %vm828, %v914
        %918 = vst.msk [vmem:[%s392 + $0x6] sm:$0xff] %vm477, %v915
        %919 = vst.msk [vmem:[%s392 + $0xe] sm:$0x3] %vm835, %v916
        %s920 = sand.u32 %s255, 1
        %s921 = scalar_lea.sflag [#allocation3], %s920
        %s922 = sand.u32 %s255, 1
        %s923 = smul.addr %s922, 16
        %s924 = scalar_lea.vmem [#allocation2], %s923
        // Predicated region
        $region57: #{tpu_custom_call.1} parent=55 // pred_check
          %p925 = pneg %p265
        $region58: #{tpu_custom_call.1} parent=55 // pred_check_branch
          %927 = sbr.rel (%p925) target = $region60
        $region59: #{tpu_custom_call.1} parent=55 // pred_region
          %s928 = smul.u32 2, %s28
          %930 = vsyncadd %s921, 0
          %s931 = smul.addr %s27, 2
          %s932 = sadd.s32 %s928, %s931
          %s933 = smul.addr %s932, 8
          %s934 = scalar_lea.hbm %s9, %s933
          %s935 = sshll.u32 %s924, 4
          %s936 = int_to_ptr.vmem [resolvable:$true] %s935
          %s937 = sshll.u32 %s934, 4
          %s938 = int_to_ptr.hbm [resolvable:$true] %s937
          %943 = dma.vmem_to_hbm [thread:$0]  %s936, 256, %s938, %s921, 128, 128, 8
        $region60: #{tpu_custom_call.1} parent=55 // pred_fallthru
          _
      $region56: #{tpu_custom_call.1} parent=5 // pred_fallthru
        _
      %p944 = scmp.le.s32.totalorder 2, %s18
      // Predicated region
      $region61: #{tpu_custom_call.1} parent=5 // pred_check
        %p945 = pneg %p944
      $region62: #{tpu_custom_call.1} parent=5 // pred_check_branch
        %947 = sbr.rel (%p945) target = $region64
      $region63: #{tpu_custom_call.1} parent=5 // pred_region
        %s948 = ssub.s32 %s18, 2
        // Predicated region
        $region65: #{tpu_custom_call.1} parent=63 // pred_check
          %p949 = pneg %p271
        $region66: #{tpu_custom_call.1} parent=63 // pred_check_branch
          %951 = sbr.rel (%p949) target = $region68
        $region67: #{tpu_custom_call.1} parent=63 // pred_region
          %s952 = sand.u32 %s256, 1
          %s953 = scalar_lea.sflag [#allocation3], %s952
          %s954 = sand.u32 %s256, 1
          %s955 = smul.addr %s954, 16
          %s956 = scalar_lea.vmem [#allocation2], %s955
          %958 = dma.done %s953, 256
        $region68: #{tpu_custom_call.1} parent=63 // pred_fallthru
          _
      $region64: #{tpu_custom_call.1} parent=5 // pred_fallthru
        _
    $region6: #{tpu_custom_call.1} parent=1 // loop_footer
      %s22 = sadd.s32 1, %s18
    $region7: #{tpu_custom_call.1} parent=1 // loop_footer_branch
      %17 = sbr.rel target = $region3
    $region8: #{tpu_custom_call.1} parent=1 // loop_exit
      _
    %959 = vsyncpa [#allocation3], 1
    %s960 = scalar_lea.sflag [#allocation3], 1
    %961 = vsyncpa %s960, 1

</llo_original>
